<compile_context>
chip_gen: v7x
topology: tpu7x:2x2x1
jax: 0.10.0
libtpu: 0.0.40
codegen_flags: <defaults>
</compile_context>

<pallas_src>
import jax
import jax.numpy as jnp
from jax import lax
from jax.experimental import pallas as pl
from jax.experimental.pallas import tpu as pltpu


def _round_up(x, m):
    return ((x + m - 1) // m) * m


def _cdiv(a, b):
    return (a + b - 1) // b


def _vmem_capacity_bytes():
    try:
        cap = getattr(pltpu.get_tpu_info(), "vmem_capacity_bytes", None)
        if cap:
            return int(cap)
    except Exception:
        pass
    return 64 * 1024 * 1024  # conservative fallback: smallest per-core VMEM (v7x)


def _spl_loss_kernel(thr_ref, lam_ref, scale_ref, tgt_ref, logits_ref, out_ref):
    thr = thr_ref[0, 0]      # threshold
    lam = lam_ref[0, 0]      # mixup lambda
    scale = scale_ref[0, 0]  # 1 + exp(-threshold), precomputed once in the wrapper

    x = logits_ref[...].astype(jnp.float32)            # (TB, C), upcast in-kernel
    rows, num_classes = x.shape

    tgt = tgt_ref[...]                                  # (TB, 2) int32
    ta = tgt[:, 0:1]                                    # (TB, 1)
    t_b = tgt[:, 1:2]                                   # (TB, 1)

    # (1, C) iota; broadcasting against the (TB, 1) targets does the rest.
    class_ids = lax.broadcasted_iota(jnp.int32, (1, num_classes), 1)
    # Single nested select.  Rows with targeta == targetb receive weight `lam` only
    # (instead of 1), but those rows carry mask = 0, so the final sum is unchanged.
    w = jnp.where(class_ids == ta, lam,
                  jnp.where(class_ids == t_b, 1.0 - lam, 0.0))

    # Per-sample mixup cross entropy: logsumexp(x) - (lam*x[ta] + (1-lam)*x[tb]).
    mx = jnp.max(x, axis=-1, keepdims=True)                                  # (TB, 1)
    lse = mx + jnp.log(jnp.sum(jnp.exp(x - mx), axis=-1, keepdims=True))     # (TB, 1)
    sel = jnp.sum(x * w, axis=-1, keepdims=True)                             # (TB, 1)
    super_loss = lse - sel                                                   # (TB, 1)

    # mask = (targeta != targetb); padded rows have ta == tb so they drop out.
    mask = (ta != t_b).astype(jnp.float32)                                   # (TB, 1)

    # Self-paced weight.  Exact divide (cold (TB,1) path); clamp the exponent so a
    # very confident/wrong sample gives v -> 0 instead of inf/NaN propagation.
    z = jnp.minimum(super_loss - thr, 80.0)
    v = scale / (1.0 + jnp.exp(z))

    part_loss = jnp.sum(super_loss * v * mask)
    part_cnt = jnp.sum(mask)

    # One lane-dense (1, 8, 128) output tile per block:
    #   sublane 0 -> sum(super_loss * v * mask), sublane 1..7 -> sum(mask).
    sub = lax.broadcasted_iota(jnp.int32, out_ref.shape, 1)
    out_ref[...] = jnp.where(sub == 0, part_loss, part_cnt)


def spl_loss(logits, targeta, targetb, threshold, lam, *,
             max_block_rows=4096, target_block_bytes=8 * 1024 * 1024,
             min_rows_for_split=256):
    B, C = logits.shape
    itemsize = jnp.dtype(logits.dtype).itemsize
    bytes_per_row = C * itemsize
    # Dtype sublane minimum (f32 -> 8, bf16 -> 16, int8/fp8 -> 32).
    sub_min = max(8, 32 // itemsize)

    # Let the byte budget pick the tile; cap at max_block_rows for huge batches.
    rows_fit = max(1, target_block_bytes // bytes_per_row)
    block_rows = min(max_block_rows, rows_fit)
    block_rows = max(sub_min, (block_rows // sub_min) * sub_min)

    b_pad_min = _round_up(B, sub_min)
    if block_rows >= B:
        if b_pad_min >= min_rows_for_split and b_pad_min >= 2 * sub_min:
            # Keep >= 2 blocks so the "parallel" axis can split across v7x's two
            # TensorCores (a 1-step grid would idle one core there).
            block_rows = _round_up(_cdiv(b_pad_min, 2), sub_min)
        else:
            block_rows = b_pad_min
    b_pad = _round_up(B, block_rows)
    num_blocks = b_pad // block_rows

    # Merge the two target vectors into one (B, 2) int32 array (single DMA stream).
    ta = targeta.reshape(B).astype(jnp.int32)
    tb_t = targetb.reshape(B).astype(jnp.int32)
    tgt = jnp.stack([ta, tb_t], axis=1)                   # (B, 2)
    if b_pad != B:
        pad = b_pad - B
        logits = jnp.pad(logits, ((0, pad), (0, 0)))
        tgt = jnp.pad(tgt, ((0, pad), (0, 0)))            # padded rows: ta == tb == 0

    thr_a = jnp.asarray(threshold, jnp.float32).reshape(1, 1)
    lam_a = jnp.asarray(lam, jnp.float32).reshape(1, 1)
    scale_a = (1.0 + jnp.exp(-thr_a)).astype(jnp.float32)  # hoisted scalar numerator

    # VMEM budget: ~64 MiB scoped on v5e/v6e, ~48 MiB on v7x; raise only if the
    # double-buffered blocks of a large-C problem genuinely need more.
    cap = _vmem_capacity_bytes()
    vmem_limit = min(64 * 1024 * 1024, cap - 16 * 1024 * 1024)
    logit_block_vmem = block_rows * _round_up(C, 128) * itemsize
    tgt_block_vmem = block_rows * 128 * 4                 # (tb, 2) int32 lane-pads to 128
    needed = 2 * (logit_block_vmem + tgt_block_vmem) + (2 << 20)
    vmem_limit = int(max(vmem_limit, min(needed, cap - 8 * 1024 * 1024)))

    parts = pl.pallas_call(
        _spl_loss_kernel,
        out_shape=jax.ShapeDtypeStruct((num_blocks, 8, 128), jnp.float32),
        grid=(num_blocks,),
        in_specs=[
            pl.BlockSpec(memory_space=pltpu.MemorySpace.SMEM),   # threshold (1,1)
            pl.BlockSpec(memory_space=pltpu.MemorySpace.SMEM),   # lam (1,1)
            pl.BlockSpec(memory_space=pltpu.MemorySpace.SMEM),   # 1+exp(-thr) (1,1)
            pl.BlockSpec((block_rows, 2), lambda i: (i, 0)),     # [targeta|targetb]
            pl.BlockSpec((block_rows, C), lambda i: (i, 0)),     # logits (native dtype)
        ],
        out_specs=pl.BlockSpec((1, 8, 128), lambda i: (i, 0, 0)),
        compiler_params=pltpu.CompilerParams(
            dimension_semantics=("parallel",),                   # blocks are independent
            vmem_limit_bytes=vmem_limit,
        ),
    )(thr_a, lam_a, scale_a, tgt, logits)

    total_loss = jnp.sum(parts[:, 0, 0])
    m = jnp.sum(parts[:, 1, 0])
    # NOTE: like the PyTorch original, this is NaN/Inf when every targeta == targetb.
    return total_loss / m


def _reference(logits, targeta, targetb, threshold, lam):
    logits = logits.astype(jnp.float32)
    lse = jax.scipy.special.logsumexp(logits, axis=-1)
    ce_a = lse - jnp.take_along_axis(logits, targeta[:, None], axis=-1)[:, 0]
    ce_b = lse - jnp.take_along_axis(logits, targetb[:, None], axis=-1)[:, 0]
    super_loss = lam * ce_a + (1.0 - lam) * ce_b
    mask = (targeta != targetb).astype(jnp.float32)
    m = jnp.sum(mask)
    v = (1.0 + jnp.exp(-threshold)) / (1.0 + jnp.exp(super_loss - threshold))
    return jnp.sum(super_loss * v * mask) / m


if __name__ == "__main__":
    key = jax.random.PRNGKey(0)
    k1, k2, k3, k4, k5, k6, k7, k8, k9 = jax.random.split(key, 9)

    # Test 1: f32 logits, small aligned batch (single block).
    B, C = 8, 32
    logits = jax.random.normal(k1, (B, C), dtype=jnp.float32)
    targeta = jax.random.randint(k2, (B,), 0, C, dtype=jnp.int32)
    targetb = jax.random.randint(k3, (B,), 0, C, dtype=jnp.int32)
    targetb = targetb.at[0].set((targeta[0] + 1) % C)   # guarantee m > 0
    out = jax.block_until_ready(spl_loss(logits, targeta, targetb, 0.5, 0.7))
    ref = _reference(logits, targeta, targetb, 0.5, 0.7)
    assert jnp.allclose(out, ref, rtol=2e-3, atol=2e-3), (out, ref)

    # Test 2: bf16 logits, ragged batch (padding + in-kernel upcast, single block).
    B2, C2 = 13, 40
    logits2 = jax.random.normal(k4, (B2, C2), dtype=jnp.bfloat16)
    ta2 = jax.random.randint(k5, (B2,), 0, C2, dtype=jnp.int32)
    tb2 = jax.random.randint(k6, (B2,), 0, C2, dtype=jnp.int32)
    tb2 = tb2.at[0].set((ta2[0] + 1) % C2)
    out2 = jax.block_until_ready(spl_loss(logits2, ta2, tb2, 1.25, 0.4))
    ref2 = _reference(logits2, ta2, tb2, 1.25, 0.4)
    assert jnp.allclose(out2, ref2, rtol=5e-3, atol=5e-3), (out2, ref2)

    # Test 3: bf16, larger ragged batch -> exercises the >=2-block (megacore) path.
    B3, C3 = 1000, 128
    logits3 = jax.random.normal(k7, (B3, C3), dtype=jnp.bfloat16)
    ta3 = jax.random.randint(k8, (B3,), 0, C3, dtype=jnp.int32)
    tb3 = jax.random.randint(k9, (B3,), 0, C3, dtype=jnp.int32)
    tb3 = tb3.at[0].set((ta3[0] + 1) % C3)
    out3 = jax.block_until_ready(spl_loss(logits3, ta3, tb3, 0.8, 0.6))
    ref3 = _reference(logits3, ta3, tb3, 0.8, 0.6)
    assert jnp.allclose(out3, ref3, rtol=1e-2, atol=1e-2), (out3, ref3)

    print("KERNEL_OK")
</pallas_src>

<mosaic_0001>
module attributes {stable_mosaic.version = 11 : i64} {
  func.func @_spl_loss_kernel(%arg0: i32, %arg1: memref<1x1xf32, #tpu.memory_space<smem>>, %arg2: memref<1x1xf32, #tpu.memory_space<smem>>, %arg3: memref<1x1xf32, #tpu.memory_space<smem>>, %arg4: memref<8x2xi32, #tpu.memory_space<vmem>>, %arg5: memref<8x32xf32, #tpu.memory_space<vmem>>, %arg6: memref<1x8x128xf32, #tpu.memory_space<vmem>>) attributes {dimension_semantics = [#tpu.dimension_semantics<parallel>], iteration_bounds = array<i64: 1>, scalar_prefetch = 0 : i64, scratch_operands = 0 : i64, tpu.core_type = #tpu.core_type<tc>, window_params = [{transform_indices = @transform_0, window_bounds = array<i64: 1, 1>}, {transform_indices = @transform_1, window_bounds = array<i64: 1, 1>}, {transform_indices = @transform_2, window_bounds = array<i64: 1, 1>}, {transform_indices = @transform_3, window_bounds = array<i64: 8, 2>}, {transform_indices = @transform_4, window_bounds = array<i64: 8, 32>}, {transform_indices = @transform_5, window_bounds = array<i64: 1, 8, 128>}]} {
    %c0 = arith.constant 0 : index
    %c0_0 = arith.constant 0 : index
    %0 = memref.load %arg1[%c0, %c0_0] : memref<1x1xf32, #tpu.memory_space<smem>>
    %c0_1 = arith.constant 0 : index
    %c0_2 = arith.constant 0 : index
    %1 = memref.load %arg2[%c0_1, %c0_2] : memref<1x1xf32, #tpu.memory_space<smem>>
    %c0_3 = arith.constant 0 : index
    %c0_4 = arith.constant 0 : index
    %2 = memref.load %arg3[%c0_3, %c0_4] : memref<1x1xf32, #tpu.memory_space<smem>>
    %c0_5 = arith.constant 0 : index
    %c0_6 = arith.constant 0 : index
    %3 = vector.load %arg5[%c0_5, %c0_6] : memref<8x32xf32, #tpu.memory_space<vmem>>, vector<8x32xf32>
    %c0_7 = arith.constant 0 : index
    %c0_8 = arith.constant 0 : index
    %4 = vector.load %arg4[%c0_7, %c0_8] : memref<8x2xi32, #tpu.memory_space<vmem>>, vector<8x2xi32>
    %5 = vector.extract_strided_slice %4 {offsets = [0, 0], sizes = [8, 1], strides = [1, 1]} : vector<8x2xi32> to vector<8x1xi32>
    %6 = vector.extract_strided_slice %4 {offsets = [0, 1], sizes = [8, 1], strides = [1, 1]} : vector<8x2xi32> to vector<8x1xi32>
    %7 = tpu.iota {dimensions = array<i32: 1>} : vector<1x32xi32>
    %8 = vector.broadcast %7 : vector<1x32xi32> to vector<8x32xi32>
    %9 = vector.broadcast %5 : vector<8x1xi32> to vector<8x32xi32>
    %10 = arith.cmpi eq, %8, %9 : vector<8x32xi32>
    %11 = vector.broadcast %7 : vector<1x32xi32> to vector<8x32xi32>
    %12 = vector.broadcast %6 : vector<8x1xi32> to vector<8x32xi32>
    %13 = arith.cmpi eq, %11, %12 : vector<8x32xi32>
    %cst = arith.constant 1.000000e+00 : f32
    %14 = arith.subf %cst, %1 : f32
    %cst_9 = arith.constant 0.000000e+00 : f32
    %15 = vector.broadcast %14 : f32 to vector<8x32xf32>
    %16 = vector.broadcast %cst_9 : f32 to vector<8x32xf32>
    %17 = arith.select %13, %15, %16 : vector<8x32xi1>, vector<8x32xf32>
    %18 = vector.broadcast %1 : f32 to vector<8x32xf32>
    %19 = arith.select %10, %18, %17 : vector<8x32xi1>, vector<8x32xf32>
    %cst_10 = arith.constant dense<0xFF800000> : vector<8xf32>
    %20 = vector.multi_reduction <maximumf>, %3, %cst_10 [1] : vector<8x32xf32> to vector<8xf32>
    %21 = vector.shape_cast %20 : vector<8xf32> to vector<8x1xf32>
    %22 = vector.broadcast %21 : vector<8x1xf32> to vector<8x32xf32>
    %23 = arith.subf %3, %22 : vector<8x32xf32>
    %24 = math.exp %23 : vector<8x32xf32>
    %cst_11 = arith.constant dense<0.000000e+00> : vector<8xf32>
    %25 = vector.multi_reduction <add>, %24, %cst_11 [1] : vector<8x32xf32> to vector<8xf32>
    %26 = vector.shape_cast %25 : vector<8xf32> to vector<8x1xf32>
    %27 = math.log %26 : vector<8x1xf32>
    %28 = arith.addf %21, %27 : vector<8x1xf32>
    %29 = arith.mulf %3, %19 : vector<8x32xf32>
    %cst_12 = arith.constant dense<0.000000e+00> : vector<8xf32>
    %30 = vector.multi_reduction <add>, %29, %cst_12 [1] : vector<8x32xf32> to vector<8xf32>
    %31 = vector.shape_cast %30 : vector<8xf32> to vector<8x1xf32>
    %32 = arith.subf %28, %31 : vector<8x1xf32>
    %33 = arith.cmpi ne, %5, %6 : vector<8x1xi32>
    %34 = arith.extui %33 : vector<8x1xi1> to vector<8x1xi32>
    %35 = arith.sitofp %34 : vector<8x1xi32> to vector<8x1xf32>
    %36 = vector.broadcast %0 : f32 to vector<8x1xf32>
    %37 = arith.subf %32, %36 : vector<8x1xf32>
    %cst_13 = arith.constant 8.000000e+01 : f32
    %38 = vector.broadcast %cst_13 : f32 to vector<8x1xf32>
    %39 = arith.minimumf %37, %38 : vector<8x1xf32>
    %40 = math.exp %39 : vector<8x1xf32>
    %cst_14 = arith.constant 1.000000e+00 : f32
    %41 = vector.broadcast %cst_14 : f32 to vector<8x1xf32>
    %42 = arith.addf %41, %40 : vector<8x1xf32>
    %43 = vector.broadcast %2 : f32 to vector<8x1xf32>
    %44 = arith.divf %43, %42 : vector<8x1xf32>
    %45 = arith.mulf %32, %44 : vector<8x1xf32>
    %46 = arith.mulf %45, %35 : vector<8x1xf32>
    %47 = vector.shape_cast %46 : vector<8x1xf32> to vector<1x8x1xf32>
    %cst_15 = arith.constant dense<0.000000e+00> : vector<1xf32>
    %48 = vector.multi_reduction <add>, %47, %cst_15 [1, 2] : vector<1x8x1xf32> to vector<1xf32>
    %49 = vector.shape_cast %48 : vector<1xf32> to vector<1x1x1xf32>
    %50 = vector.extract %49[0, 0, 0] : f32 from vector<1x1x1xf32>
    %51 = vector.shape_cast %35 : vector<8x1xf32> to vector<1x8x1xf32>
    %cst_16 = arith.constant dense<0.000000e+00> : vector<1xf32>
    %52 = vector.multi_reduction <add>, %51, %cst_16 [1, 2] : vector<1x8x1xf32> to vector<1xf32>
    %53 = vector.shape_cast %52 : vector<1xf32> to vector<1x1x1xf32>
    %54 = vector.extract %53[0, 0, 0] : f32 from vector<1x1x1xf32>
    %55 = tpu.iota {dimensions = array<i32: 1>} : vector<1x8x128xi32>
    %c0_i32 = arith.constant 0 : i32
    %56 = vector.broadcast %c0_i32 : i32 to vector<1x8x128xi32>
    %57 = arith.cmpi eq, %55, %56 : vector<1x8x128xi32>
    %58 = vector.broadcast %50 : f32 to vector<1x8x128xf32>
    %59 = vector.broadcast %54 : f32 to vector<1x8x128xf32>
    %60 = arith.select %57, %58, %59 : vector<1x8x128xi1>, vector<1x8x128xf32>
    %c0_17 = arith.constant 0 : index
    %c0_18 = arith.constant 0 : index
    %c0_19 = arith.constant 0 : index
    %61 = vector.load %arg6[%c0_17, %c0_18, %c0_19] : memref<1x8x128xf32, #tpu.memory_space<vmem>>, vector<1x8x128xf32>
    tpu.vector_store %arg6[%c0_17, %c0_18, %c0_19], %60 {strides = array<i32>} : memref<1x8x128xf32, #tpu.memory_space<vmem>>, vector<1x8x128xf32>,
    return
  }
  func.func @transform_0(%arg0: i32) -> (i32, i32) {
    %c0_i32 = arith.constant 0 : i32
    %c0_i32_0 = arith.constant 0 : i32
    %c0_i32_1 = arith.constant 0 : i32
    return %c0_i32, %c0_i32_0 : i32, i32
  }
  func.func @transform_1(%arg0: i32) -> (i32, i32) {
    %c0_i32 = arith.constant 0 : i32
    %c0_i32_0 = arith.constant 0 : i32
    %c0_i32_1 = arith.constant 0 : i32
    return %c0_i32, %c0_i32_0 : i32, i32
  }
  func.func @transform_2(%arg0: i32) -> (i32, i32) {
    %c0_i32 = arith.constant 0 : i32
    %c0_i32_0 = arith.constant 0 : i32
    %c0_i32_1 = arith.constant 0 : i32
    return %c0_i32, %c0_i32_0 : i32, i32
  }
  func.func @transform_3(%arg0: i32) -> (i32, i32) {
    %c0_i32 = arith.constant 0 : i32
    %c0_i32_0 = arith.constant 0 : i32
    return %arg0, %c0_i32 : i32, i32
  }
  func.func @transform_4(%arg0: i32) -> (i32, i32) {
    %c0_i32 = arith.constant 0 : i32
    %c0_i32_0 = arith.constant 0 : i32
    return %arg0, %c0_i32 : i32, i32
  }
  func.func @transform_5(%arg0: i32) -> (i32, i32, i32) {
    %c0_i32 = arith.constant 0 : i32
    %c0_i32_0 = arith.constant 0 : i32
    %c0_i32_1 = arith.constant 0 : i32
    return %arg0, %c0_i32, %c0_i32_0 : i32, i32, i32
  }
}

</mosaic_0001>

<llo_original>
// kernel: tpu_custom_call.1
$region0: #{tpu_custom_call.1}
  #allocation0 [shape = 'u32[]', space=smem, size = 0x4, offset = 0x4, fixed_abs, tag = 'smem constant byte address 0x4 - core index']
  #allocation1 [shape = 'u32[144,128]{1,0:T(1,128)}', space=vmem, size = 0x12000, scoped, tag = 'internal scratch']
  #allocation2 [shape = 'f32[1,1]{1,0:T(1,128)S(6)}', space=smem, size = 0x200, scoped, tag = 'scoped memory for tpu_custom_call.1']
  #allocation3 [shape = 'f32[1,1]{1,0:T(1,128)S(6)}', space=smem, size = 0x200, scoped, tag = 'scoped memory for tpu_custom_call.1']
  #allocation4 [shape = 'f32[1,1]{1,0:T(1,128)S(6)}', space=smem, size = 0x200, scoped, tag = 'scoped memory for tpu_custom_call.1']
  %s0 = inlined_call_operand.<no memory space> [shape: f32[1,1], index: 0, kind: input, shape index: {}]
  %s1 = inlined_call_operand.<no memory space> [shape: f32[1,1], index: 1, kind: input, shape index: {}]
  %s2 = inlined_call_operand.<no memory space> [shape: f32[1,1], index: 2, kind: input, shape index: {}]
  %s3 = inlined_call_operand.vmem [shape: s32[8,2], index: 3, kind: input, shape index: {}]
  %s4 = inlined_call_operand.vmem [shape: f32[8,32], index: 4, kind: input, shape index: {}]
  %s5 = inlined_call_operand.hbm [shape: f32[1,8,128], index: 5, kind: output, shape index: {}]
  %s6 = sld [smem:[#allocation0]]
  $region30: #{tpu_custom_call.1} parent=0
    _
  %s8 = ssub.s32 1, %s6
  %s9 = scalar_select 0, %s8, %s6
  %10 = sst [smem:[#allocation2]] %s0
  %11 = sst [smem:[#allocation3]] %s1
  %12 = sst [smem:[#allocation4]] %s2
  $region1: #{tpu_custom_call.1} parent=0
    #allocation5 [shape = 'u8[4096]{0}', space=vmem, size = 0x1000, scoped, tag = 'output window, operand 0, single buffered']
    #allocation6 [shape = 's32[1]{0}', space=sflag, size = 0x4, scoped, tag = 'scoped memory for tpu_custom_call.1']
    %13 = vsyncpa [#allocation6], 0
    // Predicated region
    $region2: #{tpu_custom_call.1} parent=1 // pred_check
      _
    $region3: #{tpu_custom_call.1} parent=1 // pred_check_branch
      %15 = sbr.rel (0) target = $region5
    $region4: #{tpu_custom_call.1} parent=1 // pred_region
      _
    $region5: #{tpu_custom_call.1} parent=1 // pred_fallthru
      _
    // Predicated region
    $region6: #{tpu_custom_call.1} parent=1 // pred_check
      _
    $region7: #{tpu_custom_call.1} parent=1 // pred_check_branch
      %17 = sbr.rel (0) target = $region9
    $region8: #{tpu_custom_call.1} parent=1 // pred_region
      _
    $region9: #{tpu_custom_call.1} parent=1 // pred_fallthru
      _
    // Predicated region
    $region10: #{tpu_custom_call.1} parent=1 // pred_check
      _
    $region11: #{tpu_custom_call.1} parent=1 // pred_check_branch
      %19 = sbr.rel (0) target = $region13
    $region12: #{tpu_custom_call.1} parent=1 // pred_region
      _
    $region13: #{tpu_custom_call.1} parent=1 // pred_fallthru
      _
    // Predicated region
    $region14: #{tpu_custom_call.1} parent=1 // pred_check
      _
    $region15: #{tpu_custom_call.1} parent=1 // pred_check_branch
      %21 = sbr.rel (0) target = $region17
    $region16: #{tpu_custom_call.1} parent=1 // pred_region
      _
    $region17: #{tpu_custom_call.1} parent=1 // pred_fallthru
      _
    // Predicated region
    $region18: #{tpu_custom_call.1} parent=1 // pred_check
      _
    $region19: #{tpu_custom_call.1} parent=1 // pred_check_branch
      %23 = sbr.rel (0) target = $region21
    $region20: #{tpu_custom_call.1} parent=1 // pred_region
      _
    $region21: #{tpu_custom_call.1} parent=1 // pred_fallthru
      _
    %s24 = sld [smem:[#allocation2]]
    %s25 = sld [smem:[#allocation3]]
    %s26 = sld [smem:[#allocation4]]
    %v27 = vld [vmem:[%s4] sm:$0xff]
    %v28 = vld [vmem:[%s3] sm:$0xff]
    %v29 = vlaneseq
    %v30 = vand.u32 %v29, 127
    %31 = vset.pattern.permute.xlu0 0
    %32 = vperm.xlu0 %31, %v28
    %v33 = vpop.permute.xlu0 %32
    %vm34 = vcmp.eq.s32.totalorder %v30, %v33
    %35 = vset.pattern.permute.xlu0 1
    %36 = vperm.xlu0 %35, %v28
    %v37 = vpop.permute.xlu0 %36
    %vm38 = vcmp.eq.s32.totalorder %v30, %v37
    %s39 = ssub.f32 1.0, %s25
    %v40 = vstv %s39
    %v41 = vsel %vm38, %v40, 0.0
    %v42 = vstv %s25
    %v43 = vsel %vm34, %v42, %v41
    %vm44 = vcmask 261120
    %v45 = vsel %vm44, %v27, -inf
    %46 = vmax.xlane.f32.xlu0 %v45
    %v47 = vpop.xlane.xlu0 %46
    %v48 = vsub.f32 %v27, %v47
    %v49 = vmul.f32 %v48, 1.442695
    %v50 = vpow.pop %v49
    %v51 = vsel %vm44, %v50, 0.0
    %52 = vadd.xlane.f32.xlu0 %v51
    %v53 = vpop.xlane.xlu0 %52
    %v54 = vlog2.pop %v53
    %v55 = vmul.f32 %v54, 0.6931472
    %v56 = vadd.f32 %v47, %v55
    %v57 = vmul.f32 %v27, %v43
    %v58 = vsel %vm44, %v57, 0.0
    %59 = vadd.xlane.f32.xlu0 %v58
    %v60 = vpop.xlane.xlu0 %59
    %v61 = vsub.f32 %v56, %v60
    %62 = vrot.lane.b32.xlu0 %v28, 127
    %v63 = vpop.permute.xlu0 %62
    %vm64 = vcmp.ne.s32.totalorder %v28, %v63
    %v65 = vsel %vm64, 1, 0
    %v66 = vcvt.s32.f32 %v65
    %v67 = vstv %s24
    %v68 = vsub.f32 %v61, %v67
    %v69 = vmin.f32 %v68, 80.0
    %v70 = vmul.f32 %v69, 1.442695
    %v71 = vpow.pop %v70
    %v72 = vadd.f32 %v71, 1.0
    %v73 = vstv %s26
    %v74 = vrcp.pop %v72
    %v75 = vmul.f32 %v73, %v74
    %v76 = vmul.f32 %v61, %v75
    %v77 = vmul.f32 %v76, %v66
    %vm78 = vcmask 7168
    %v79 = vsel %vm78, %v77, 0.0
    %80 = vadd.xlane.f32.xlu0 %v79
    %v81 = vpop.xlane.xlu0 %80
    %v82 = vrot.slane %v81, 4
    %v83 = vadd.f32 %v81, %v82
    %v84 = vrot.slane %v83, 2
    %v85 = vadd.f32 %v83, %v84
    %v86 = vrot.slane %v85, 1
    %v87 = vadd.f32 %v85, %v86
    %s88 = vtos %v87
    %v89 = vsel %vm78, %v66, 0.0
    %90 = vadd.xlane.f32.xlu0 %v89
    %v91 = vpop.xlane.xlu0 %90
    %v92 = vrot.slane %v91, 4
    %v93 = vadd.f32 %v91, %v92
    %v94 = vrot.slane %v93, 2
    %v95 = vadd.f32 %v93, %v94
    %v96 = vrot.slane %v95, 1
    %v97 = vadd.f32 %v95, %v96
    %s98 = vtos %v97
    %v99 = vlaneseq
    %v100 = vshrl.u32 %v99, 7
    %vm101 = vcmp.eq.s32.totalorder %v100, 0
    %v102 = vstv %s88
    %v103 = vstv %s98
    %v104 = vsel %vm101, %v102, %v103
    %105 = vst [vmem:[#allocation5] sm:$0xff] %v104
    // Predicated region
    $region22: #{tpu_custom_call.1} parent=1 // pred_check
      _
    $region23: #{tpu_custom_call.1} parent=1 // pred_check_branch
      %107 = sbr.rel (0) target = $region25
    $region24: #{tpu_custom_call.1} parent=1 // pred_region
      %s109 = ssub.s32 128, 128
      %110 = vsyncadd [#allocation6], %s109
      %s112 = sshll.u32 [#allocation5], 4
      %s113 = int_to_ptr.vmem [resolvable:$true] %s112
      %115 = dma.vmem_to_hbm [thread:$0]  %s113, 128, %s5, [#allocation6]
    $region25: #{tpu_custom_call.1} parent=1 // pred_fallthru
      _
    // Predicated region
    $region26: #{tpu_custom_call.1} parent=1 // pred_check
      _
    $region27: #{tpu_custom_call.1} parent=1 // pred_check_branch
      %117 = sbr.rel (0) target = $region29
    $region28: #{tpu_custom_call.1} parent=1 // pred_region
      %118 = dma.done [#allocation6], 128
    $region29: #{tpu_custom_call.1} parent=1 // pred_fallthru
      _
    %119 = vsyncpa [#allocation6], 1

</llo_original>
